<compile_context>
chip_gen: v5e
topology: v5e:2x2
jax: 0.10.0
libtpu: 0.0.40
codegen_flags: <defaults>
</compile_context>

<pallas_src>
import math
import jax
import jax.numpy as jnp
from jax.experimental import pallas as pl
from jax.experimental.pallas import tpu as pltpu


# ---------------- static index bookkeeping (pure python) ----------------
def check_degree_range(L):
    return (0, int(L)) if isinstance(L, int) else (int(L[0]), int(L[1]))


def degree_order_to_index(l, m, l_min=0):
    return l * l + l + m - l_min * l_min


def num_order_between(l_min, l_max):
    return (l_max + 1) ** 2 - l_min ** 2


def _so2_indices(L_in, L_out):
    """Python re-implementation of equitorch's _so2_indices (no torch)."""
    L_in = check_degree_range(L_in)
    L_out = check_degree_range(L_out)
    triples = [(l_out, l_in, m_weight)
               for l_out in range(L_out[0], L_out[1] + 1)
               for l_in in range(L_in[0], L_in[1] + 1)
               for m_weight in range(-min(l_out, l_in), min(l_out, l_in) + 1)]
    ret = []
    for weight_idx, (l_out, l_in, m_weight) in enumerate(triples):
        pairs = (((-m_weight, -abs(m_weight)), (m_weight, abs(m_weight)))
                 if m_weight != 0 else ((0, 0),))
        for m_out, m_in in pairs:
            ret.append((degree_order_to_index(l_out, m_out, L_out[0]),
                        degree_order_to_index(l_in, m_in, L_in[0]),
                        l_in, l_out,
                        -1.0 if (m_out > 0 and m_in < 0) else 1.0,
                        weight_idx))
    ret = sorted(ret)
    M_out = [t[0] for t in ret]
    M_in = [t[1] for t in ret]
    weight_sign = [t[4] for t in ret]
    weight_index = [t[5] for t in ret]
    return M_out, M_in, weight_sign, weight_index


def _round_up(v, m):
    return (v + m - 1) // m * m


# ---------------- dense weight construction (once per weight update) ----------------
def _build_dense_weight(w, M_out, M_in, signs, widx, Min, Mout, Cin, Cout):
    """Wd[q*Cin + i, p*Cout + j] = sum over entries e with (M_in_e, M_out_e)==(q, p)
    of sign_e * w[widx_e, i, j]; zero for non-contributing blocks.  No (q, p) pair
    is generated twice by _so2_indices, so the scatter-add never double counts."""
    p = jnp.asarray(M_out, jnp.int32)
    q = jnp.asarray(M_in, jnp.int32)
    s = jnp.asarray(signs, w.dtype)
    wi = jnp.asarray(widx, jnp.int32)
    Wg = w[wi] * s[:, None, None]                                    # (E, Cin, Cout)
    Wd4 = jnp.zeros((Min, Mout, Cin, Cout), w.dtype).at[q, p].add(Wg)
    return Wd4.transpose(0, 2, 1, 3).reshape(Min * Cin, Mout * Cout)


def so2_dense_weight(weight, L_in, L_out, compute_dtype=None):
    """Build Wd : (Min*Cin, Mout*Cout).  Call once per weight update and pass the
    result to so2_linear(dense_weight=...) so forwards don't rebuild it."""
    L_in = check_degree_range(L_in)
    L_out = check_degree_range(L_out)
    M_out, M_in, signs, widx = _so2_indices(L_in, L_out)
    Min = num_order_between(*L_in)
    Mout = num_order_between(*L_out)
    nw, Cin, Cout = weight.shape[1], weight.shape[2], weight.shape[3]
    w = weight.reshape(nw, Cin, Cout)
    cdt = compute_dtype if compute_dtype is not None else weight.dtype
    return _build_dense_weight(w.astype(cdt), M_out, M_in, signs, widx,
                               Min, Mout, Cin, Cout)


# ---------------- Pallas kernel ----------------
def so2_matmul_kernel(x_ref, w_ref, o_ref):
    # x_ref: (bn, Min*Cin)   w_ref: (Min*Cin, Mout*Cout)   o_ref: (bn, Mout*Cout)
    o_ref[...] = jnp.dot(
        x_ref[...], w_ref[...], preferred_element_type=jnp.float32
    ).astype(o_ref.dtype)


def so2_linear(x, weight, L_in, L_out, *, dense_weight=None, block_n=None,
               compute_dtype=None):
    """SO2Linear forward (channel_wise=False).
    x: (N, num_orders_in, Cin)   weight: (1, num_weights, Cin, Cout)
    dense_weight: optional precomputed Wd from so2_dense_weight (avoids rebuild).
    returns: (N, num_orders_out, Cout)
    """
    L_in = check_degree_range(L_in)
    L_out = check_degree_range(L_out)
    Min_exp = num_order_between(*L_in)
    Mout = num_order_between(*L_out)

    N, Min, Cin = x.shape
    assert Min == Min_exp, "x order dimension inconsistent with L_in"
    Cout = weight.shape[3]

    out_dtype = x.dtype
    cdt = jnp.dtype(compute_dtype) if compute_dtype is not None else x.dtype

    # Dense signed weight (prefer a cached one from so2_dense_weight).
    Wd = dense_weight if dense_weight is not None else so2_dense_weight(
        weight, L_in, L_out, cdt)
    if Wd.dtype != cdt:
        Wd = Wd.astype(cdt)

    x2d = x.reshape(N, Min * Cin)
    if x2d.dtype != cdt:
        x2d = x2d.astype(cdt)   # ideally carry bf16 end-to-end so no extra HBM pass

    K = Min * Cin
    Nc = Mout * Cout

    # ---- batch-tile selection ----
    sub_mult = 16 if cdt == jnp.bfloat16 else 8
    if block_n is not None:
        bn = min(int(block_n), N)
    else:
        # Large tile to amortize ~0.35us/step overhead, but keep >=2 grid steps
        # so v7x's two TensorCores both get work (and DMA pipelines w/ compute).
        bn = min(2048, _round_up(pl.cdiv(N, 2), sub_mult))
    if bn >= N:
        bn = N                                    # full block: no (8,128) constraint
    else:
        bn = max(sub_mult, _round_up(bn, sub_mult))
        if bn >= N:
            bn = N
    grid = (pl.cdiv(N, bn),)                      # no padding; Pallas masks boundary

    # ---- right-sized VMEM limit (v7x only has 64 MiB/core) ----
    dsize = jnp.dtype(cdt).itemsize
    osize = jnp.dtype(out_dtype).itemsize
    vmem_bytes = 2 * bn * K * dsize + 2 * bn * Nc * osize + 2 * K * Nc * dsize
    vmem_limit = int(min(max(vmem_bytes + (8 << 20), 16 << 20), 64 << 20))

    out2d = pl.pallas_call(
        so2_matmul_kernel,
        out_shape=jax.ShapeDtypeStruct((N, Nc), out_dtype),
        grid=grid,
        in_specs=[
            pl.BlockSpec((bn, K), lambda i: (i, 0)),    # batch-tiled, lane-dense x
            pl.BlockSpec((K, Nc), lambda i: (0, 0)),    # dense weight resident in VMEM
        ],
        out_specs=pl.BlockSpec((bn, Nc), lambda i: (i, 0)),  # lane-dense output slab
        compiler_params=pltpu.CompilerParams(
            dimension_semantics=("parallel",),
            vmem_limit_bytes=vmem_limit,
        ),
    )(x2d, Wd)

    return out2d.reshape(N, Mout, Cout)


# ---------------- pure-JAX reference ----------------
def so2_linear_ref(x, weight, L_in, L_out):
    M_out, M_in, weight_sign, weight_index = _so2_indices(L_in, L_out)
    out_ms = num_order_between(*check_degree_range(L_out))
    W = weight[0][jnp.array(weight_index)] * jnp.array(weight_sign, x.dtype)[:, None, None]
    X = x[:, jnp.array(M_in), :]
    out_m = jnp.einsum('nmi,mio->nmo', X, W)
    out = jnp.zeros((x.shape[0], out_ms, W.shape[-1]), x.dtype)
    return out.at[:, jnp.array(M_out), :].add(out_m)


if __name__ == "__main__":
    L_in, L_out = (0, 2), (0, 2)
    Cin, Cout, N = 16, 32, 256   # default tiling -> bn=128, grid=(2,): 2 steps / 2 TCs

    Min = num_order_between(*L_in)
    Mout = num_order_between(*L_out)
    _, _, _, widx = _so2_indices(L_in, L_out)
    num_weights = max(widx) + 1  # 19 for L=(0,2)

    key = jax.random.PRNGKey(0)
    kx, kw = jax.random.split(key)
    x = jax.random.normal(kx, (N, Min, Cin), jnp.float32)
    # matches nn.Parameter(torch.randn(1, num_weights, Cin, Cout) * 2 / sqrt(Cin + Cout))
    weight = jax.random.normal(kw, (1, num_weights, Cin, Cout), jnp.float32) * (
        2.0 / math.sqrt(Cin + Cout))

    # Dense signed weight built ONCE per weight update, reused across forwards.
    Wd = jax.block_until_ready(so2_dense_weight(weight, L_in, L_out))

    out = so2_linear(x, weight, L_in, L_out, dense_weight=Wd)
    out = jax.block_until_ready(out)

    ref = so2_linear_ref(x, weight, L_in, L_out)
    assert out.shape == (N, Mout, Cout)
    assert jnp.allclose(out, ref, atol=1e-4, rtol=1e-4), "mismatch vs reference"
    print("KERNEL_OK")
</pallas_src>

<mosaic_0001>
module attributes {stable_mosaic.version = 11 : i64} {
  func.func @so2_matmul_kernel(%arg0: i32, %arg1: memref<128x144xf32, #tpu.memory_space<vmem>>, %arg2: memref<144x288xf32, #tpu.memory_space<vmem>>, %arg3: memref<128x288xf32, #tpu.memory_space<vmem>>) attributes {dimension_semantics = [#tpu.dimension_semantics<parallel>], iteration_bounds = array<i64: 2>, scalar_prefetch = 0 : i64, scratch_operands = 0 : i64, tpu.core_type = #tpu.core_type<tc>, window_params = [{transform_indices = @transform_0, window_bounds = array<i64: 128, 144>}, {pipeline_mode = #tpu.pipeline_mode<synchronous>, transform_indices = @transform_1, window_bounds = array<i64: 144, 288>}, {transform_indices = @transform_2, window_bounds = array<i64: 128, 288>}]} {
    %c0 = arith.constant 0 : index
    %c0_0 = arith.constant 0 : index
    %0 = vector.load %arg1[%c0, %c0_0] : memref<128x144xf32, #tpu.memory_space<vmem>>, vector<128x144xf32>
    %c0_1 = arith.constant 0 : index
    %c0_2 = arith.constant 0 : index
    %1 = vector.load %arg2[%c0_1, %c0_2] : memref<144x288xf32, #tpu.memory_space<vmem>>, vector<144x288xf32>
    %cst = arith.constant dense<0.000000e+00> : vector<128x288xf32>
    %2 = tpu.matmul %0, %1, %cst {dimension_numbers = #tpu.dot_dimension_numbers<[1], [0], [0], [1], [0, 0, 1, 1], [], []>} : vector<128x144xf32>, vector<144x288xf32>, vector<128x288xf32> -> vector<128x288xf32>
    %c0_3 = arith.constant 0 : index
    %c0_4 = arith.constant 0 : index
    %3 = vector.load %arg3[%c0_3, %c0_4] : memref<128x288xf32, #tpu.memory_space<vmem>>, vector<128x288xf32>
    tpu.vector_store %arg3[%c0_3, %c0_4], %2 {strides = array<i32>} : memref<128x288xf32, #tpu.memory_space<vmem>>, vector<128x288xf32>,
    return
  }
  func.func @transform_0(%arg0: i32) -> (i32, i32) {
    %c0_i32 = arith.constant 0 : i32
    %c0_i32_0 = arith.constant 0 : i32
    return %arg0, %c0_i32 : i32, i32
  }
  func.func @transform_1(%arg0: i32) -> (i32, i32) {
    %c0_i32 = arith.constant 0 : i32
    %c0_i32_0 = arith.constant 0 : i32
    %c0_i32_1 = arith.constant 0 : i32
    return %c0_i32, %c0_i32_0 : i32, i32
  }
  func.func @transform_2(%arg0: i32) -> (i32, i32) {
    %c0_i32 = arith.constant 0 : i32
    %c0_i32_0 = arith.constant 0 : i32
    return %arg0, %c0_i32 : i32, i32
  }
}

</mosaic_0001>

<llo_original>
// kernel: tpu_custom_call.1
$region0: #{tpu_custom_call.1}
  #allocation0 [shape = 'u32[]', space=smem, size = 0x4, offset = 0x4, fixed_abs, tag = 'smem constant byte address 0x4 - core index']
  #allocation1 [shape = 'u32[72,128]{1,0:T(1,128)}', space=vmem, size = 0x9000, scoped, tag = 'internal scratch']
  %s0 = inlined_call_operand.vmem [shape: f32[256,144], index: 0, kind: input, shape index: {}]
  %s1 = inlined_call_operand.vmem [shape: f32[144,288], index: 1, kind: input, shape index: {}]
  %s2 = inlined_call_operand.vmem [shape: f32[256,288], index: 2, kind: output, shape index: {}]
  %s3 = sld [smem:[#allocation0]]
  $region41: #{tpu_custom_call.1} parent=0
    _
  %s5 = ssub.s32 1, %s3
  %s6 = scalar_select 0, %s5, %s3
  loop: start=0, step=1, limit=4
  $region2: #{tpu_custom_call.1} parent=0 // loop_pre_header
    _
  $region3: #{tpu_custom_call.1} parent=0 // loop_header
    %s8 = sphi 0, %s12
    %p9 = scmp.ge.s32.totalorder %s8, 4
    %s18 = sphi 0, %s20
    %s21 = sphi 0, %s18
    %s22 = sphi 0, %s21
    %s38 = sphi 0, %s22
    %s42 = sphi 0, %s42
    %s44 = sphi 0, %s42
    %s45 = sphi 0, %s44
    %s59 = sphi 0, %s45
    %s65 = sphi 0, %s67
    %s68 = sphi 0, %s65
    %s69 = sphi 0, %s68
    %s85 = sphi 0, %s69
  $region4: #{tpu_custom_call.1} parent=0 // loop_header_branch
    %11 = sbr.rel (%p9) target = $region8
  $region5: #{tpu_custom_call.1} parent=0 // loop_body
    %s13 = ssub.s32 %s8, 1
    %s14 = ssub.s32 %s8, 2
    %s15 = sadd.s32 %s8, 1
    %s16 = ssub.s32 %s8, %s15
    %p17 = scmp.eq.s32.totalorder %s16, 0
    %s19 = sadd.s32 %s18, 1
    %s20 = scalar_select %p17, %s18, %s19
    %p23 = pneg %p17
    %p24 = scmp.eq.s32.totalorder %s8, 1
    %p25 = por %p23, %p24
    %p26 = scmp.ne.s32.totalorder %s18, %s21
    %p27 = scmp.eq.s32.totalorder %s8, 0
    %p28 = por %p26, %p27
    %p29 = scmp.ne.s32.totalorder %s18, %s21
    %p30 = scmp.eq.s32.totalorder %s13, 1
    %p31 = por %p29, %p30
    %p32 = scmp.ne.s32.totalorder %s21, %s22
    %p33 = scmp.eq.s32.totalorder %s13, 0
    %p34 = por %p32, %p33
    %p35 = scmp.ne.s32.totalorder %s21, %s22
    %p36 = scmp.eq.s32.totalorder %s14, 1
    %p37 = por %p35, %p36
    %p39 = scmp.ne.s32.totalorder %s22, %s38
    %p40 = scmp.eq.s32.totalorder %s14, 0
    %p41 = por %p39, %p40
    %s43 = sadd.s32 %s42, 1
    %p46 = scmp.eq.s32.totalorder %s8, 1
    %p47 = scmp.ne.s32.totalorder %s42, %s44
    %p48 = scmp.eq.s32.totalorder %s8, 0
    %p49 = por %p47, %p48
    %p50 = scmp.ne.s32.totalorder %s42, %s44
    %p51 = scmp.eq.s32.totalorder %s13, 1
    %p52 = por %p50, %p51
    %p53 = scmp.ne.s32.totalorder %s44, %s45
    %p54 = scmp.eq.s32.totalorder %s13, 0
    %p55 = por %p53, %p54
    %p56 = scmp.ne.s32.totalorder %s44, %s45
    %p57 = scmp.eq.s32.totalorder %s14, 1
    %p58 = por %p56, %p57
    %p60 = scmp.ne.s32.totalorder %s45, %s59
    %p61 = scmp.eq.s32.totalorder %s14, 0
    %p62 = por %p60, %p61
    %s63 = ssub.s32 %s8, %s15
    %p64 = scmp.eq.s32.totalorder %s63, 0
    %s66 = sadd.s32 %s65, 1
    %s67 = scalar_select %p64, %s65, %s66
    %p70 = pneg %p64
    %p71 = scmp.eq.s32.totalorder %s8, 1
    %p72 = por %p70, %p71
    %p73 = scmp.ne.s32.totalorder %s65, %s68
    %p74 = scmp.eq.s32.totalorder %s8, 0
    %p75 = por %p73, %p74
    %p76 = scmp.ne.s32.totalorder %s65, %s68
    %p77 = scmp.eq.s32.totalorder %s13, 1
    %p78 = por %p76, %p77
    %p79 = scmp.ne.s32.totalorder %s68, %s69
    %p80 = scmp.eq.s32.totalorder %s13, 0
    %p81 = por %p79, %p80
    %p82 = scmp.ne.s32.totalorder %s68, %s69
    %p83 = scmp.eq.s32.totalorder %s14, 1
    %p84 = por %p82, %p83
    %p86 = scmp.ne.s32.totalorder %s69, %s85
    %p87 = scmp.eq.s32.totalorder %s14, 0
    %p88 = por %p86, %p87
    %p89 = scmp.le.s32.totalorder 1, %s8
    %p90 = scmp.lt.s32.totalorder %s8, 3
    %p91 = pnand %p89, %p90
    %p92 = pneg %p91
    // Predicated region
    $region9: #{tpu_custom_call.1} parent=5 // pred_check
      _
    $region10: #{tpu_custom_call.1} parent=5 // pred_check_branch
      %94 = sbr.rel (%p91) target = $region12
    $region11: #{tpu_custom_call.1} parent=5 // pred_region
      %s95 = ssub.s32 %s8, 1
      // Predicated region
      $region13: #{tpu_custom_call.1} parent=11 // pred_check
        %p96 = pneg %p55
      $region14: #{tpu_custom_call.1} parent=11 // pred_check_branch
        %98 = sbr.rel (%p96) target = $region16
      $region15: #{tpu_custom_call.1} parent=11 // pred_region
        _
      $region16: #{tpu_custom_call.1} parent=11 // pred_fallthru
        _
    $region12: #{tpu_custom_call.1} parent=5 // pred_fallthru
      _
    %p99 = scmp.lt.s32.totalorder %s8, 2
    // Predicated region
    $region17: #{tpu_custom_call.1} parent=5 // pred_check
      %p100 = pneg %p99
    $region18: #{tpu_custom_call.1} parent=5 // pred_check_branch
      %102 = sbr.rel (%p100) target = $region20
    $region19: #{tpu_custom_call.1} parent=5 // pred_region
      // Predicated region
      $region21: #{tpu_custom_call.1} parent=19 // pred_check
        %p103 = pneg %p28
      $region22: #{tpu_custom_call.1} parent=19 // pred_check_branch
        %105 = sbr.rel (%p103) target = $region24
      $region23: #{tpu_custom_call.1} parent=19 // pred_region
        %s106 = smul.u32 16, %s8
        %p107 = scmp.lt.s32.totalorder %s106, 31
        %s108 = scalar_select %p107, %s106, 31
        %s109 = smul.addr %s108, 2
        %s110 = smul.addr %s109, 8
        %s111 = scalar_lea.vmem %s0, %s110
        %s112 = smul.u32 16, %s8
      $region24: #{tpu_custom_call.1} parent=19 // pred_fallthru
        _
    $region20: #{tpu_custom_call.1} parent=5 // pred_fallthru
      _
    %p113 = scmp.le.s32.totalorder 1, %s8
    %p114 = scmp.lt.s32.totalorder %s8, 3
    %p115 = pnand %p113, %p114
    %p116 = pneg %p115
    // Predicated region
    $region25: #{tpu_custom_call.1} parent=5 // pred_check
      _
    $region26: #{tpu_custom_call.1} parent=5 // pred_check_branch
      %118 = sbr.rel (%p115) target = $region28
    $region27: #{tpu_custom_call.1} parent=5 // pred_region
      %s119 = ssub.s32 %s8, 1
      %s120 = smul.u32 16, %s13
      %p121 = scmp.lt.s32.totalorder %s120, 31
      %s122 = scalar_select %p121, %s120, 31
      %s123 = smul.addr %s122, 2
      %s124 = smul.addr %s123, 8
      %s125 = scalar_lea.vmem %s0, %s124
      %p126 = pneg %p34
      %p127 = pneg %p31
      %p128 = pneg %p55
      %p129 = pneg %p52
      %p130 = pneg %p81
      %p131 = pneg %p78
      %s132 = smul.u32 16, %s13
      %p133 = scmp.lt.s32.totalorder %s132, 31
      %s134 = scalar_select %p133, %s132, 31
      %s135 = smul.addr %s134, 3
      %s136 = smul.addr %s135, 8
      %s137 = scalar_lea.vmem %s2, %s136
      %s138 = smul.u32 16, %s13
      %p139 = scmp.lt.s32.totalorder %s138, 31
      %s140 = scalar_select %p139, %s138, 31
      %s141 = smul.addr %s140, 2
      %s142 = smul.addr %s141, 8
      %s143 = scalar_lea.vmem %s0, %s142
      %s144 = smul.u32 16, %s13
      %s145 = smul.u32 16, %s13
      %p146 = scmp.lt.s32.totalorder %s145, 31
      %s147 = scalar_select %p146, %s145, 31
      %s148 = smul.addr %s147, 3
      %s149 = smul.addr %s148, 8
      %s150 = scalar_lea.vmem %s2, %s149
      %s151 = smul.u32 16, %s13
      %v152 = vld [vmem:[%s143] sm:$0xff]
      %v153 = vld [vmem:[%s143 + $0x8] sm:$0xff]
      %v154 = vld [vmem:[%s143 + $0x10] sm:$0xff]
      %v155 = vld [vmem:[%s143 + $0x18] sm:$0xff]
      %v156 = vld [vmem:[%s143 + $0x20] sm:$0xff]
      %v157 = vld [vmem:[%s143 + $0x28] sm:$0xff]
      %v158 = vld [vmem:[%s143 + $0x30] sm:$0xff]
      %v159 = vld [vmem:[%s143 + $0x38] sm:$0xff]
      %v160 = vld [vmem:[%s143 + $0x40] sm:$0xff]
      %v161 = vld [vmem:[%s143 + $0x48] sm:$0xff]
      %v162 = vld [vmem:[%s143 + $0x50] sm:$0xff]
      %v163 = vld [vmem:[%s143 + $0x58] sm:$0xff]
      %v164 = vld [vmem:[%s143 + $0x60] sm:$0xff]
      %v165 = vld [vmem:[%s143 + $0x68] sm:$0xff]
      %v166 = vld [vmem:[%s143 + $0x70] sm:$0xff]
      %v167 = vld [vmem:[%s143 + $0x78] sm:$0xff]
      %v168 = vld [vmem:[%s143 + $0x80] sm:$0xff]
      %v169 = vld [vmem:[%s143 + $0x88] sm:$0xff]
      %v170 = vld [vmem:[%s143 + $0x90] sm:$0xff]
      %v171 = vld [vmem:[%s143 + $0x98] sm:$0xff]
      %v172 = vld [vmem:[%s143 + $0xa0] sm:$0xff]
      %v173 = vld [vmem:[%s143 + $0xa8] sm:$0xff]
      %v174 = vld [vmem:[%s143 + $0xb0] sm:$0xff]
      %v175 = vld [vmem:[%s143 + $0xb8] sm:$0xff]
      %v176 = vld [vmem:[%s143 + $0xc0] sm:$0xff]
      %v177 = vld [vmem:[%s143 + $0xc8] sm:$0xff]
      %v178 = vld [vmem:[%s143 + $0xd0] sm:$0xff]
      %v179 = vld [vmem:[%s143 + $0xd8] sm:$0xff]
      %v180 = vld [vmem:[%s143 + $0xe0] sm:$0xff]
      %v181 = vld [vmem:[%s143 + $0xe8] sm:$0xff]
      %v182 = vld [vmem:[%s143 + $0xf0] sm:$0xff]
      %v183 = vld [vmem:[%s143 + $0xf8] sm:$0xff]
      %v184 = vld [vmem:[%s1] sm:$0xff]
      %v185 = vld [vmem:[%s1 + $0x8] sm:$0xff]
      %v186 = vld [vmem:[%s1 + $0x10] sm:$0xff]
      %v187 = vld [vmem:[%s1 + $0x18] sm:$0xff]
      %v188 = vld [vmem:[%s1 + $0x20] sm:$0xff]
      %v189 = vld [vmem:[%s1 + $0x28] sm:$0xff]
      %v190 = vld [vmem:[%s1 + $0x30] sm:$0xff]
      %v191 = vld [vmem:[%s1 + $0x38] sm:$0xff]
      %v192 = vld [vmem:[%s1 + $0x40] sm:$0xff]
      %v193 = vld [vmem:[%s1 + $0x48] sm:$0xff]
      %v194 = vld [vmem:[%s1 + $0x50] sm:$0xff]
      %v195 = vld [vmem:[%s1 + $0x58] sm:$0xff]
      %v196 = vld [vmem:[%s1 + $0x60] sm:$0xff]
      %v197 = vld [vmem:[%s1 + $0x68] sm:$0xff]
      %v198 = vld [vmem:[%s1 + $0x70] sm:$0xff]
      %v199 = vld [vmem:[%s1 + $0x78] sm:$0xff]
      %v200 = vld [vmem:[%s1 + $0x80] sm:$0xff]
      %v201 = vld [vmem:[%s1 + $0x88] sm:$0xff]
      %v202 = vld [vmem:[%s1 + $0x90] sm:$0xff]
      %v203 = vld [vmem:[%s1 + $0x98] sm:$0xff]
      %v204 = vld [vmem:[%s1 + $0xa0] sm:$0xff]
      %v205 = vld [vmem:[%s1 + $0xa8] sm:$0xff]
      %v206 = vld [vmem:[%s1 + $0xb0] sm:$0xff]
      %v207 = vld [vmem:[%s1 + $0xb8] sm:$0xff]
      %v208 = vld [vmem:[%s1 + $0xc0] sm:$0xff]
      %v209 = vld [vmem:[%s1 + $0xc8] sm:$0xff]
      %v210 = vld [vmem:[%s1 + $0xd0] sm:$0xff]
      %v211 = vld [vmem:[%s1 + $0xd8] sm:$0xff]
      %v212 = vld [vmem:[%s1 + $0xe0] sm:$0xff]
      %v213 = vld [vmem:[%s1 + $0xe8] sm:$0xff]
      %v214 = vld [vmem:[%s1 + $0xf0] sm:$0xff]
      %v215 = vld [vmem:[%s1 + $0xf8] sm:$0xff]
      %v216 = vld [vmem:[%s1 + $0x100] sm:$0xff]
      %v217 = vld [vmem:[%s1 + $0x108] sm:$0xff]
      %v218 = vld [vmem:[%s1 + $0x110] sm:$0xff]
      %v219 = vld [vmem:[%s1 + $0x118] sm:$0xff]
      %v220 = vld [vmem:[%s1 + $0x120] sm:$0xff]
      %v221 = vld [vmem:[%s1 + $0x128] sm:$0xff]
      %v222 = vld [vmem:[%s1 + $0x130] sm:$0xff]
      %v223 = vld [vmem:[%s1 + $0x138] sm:$0xff]
      %v224 = vld [vmem:[%s1 + $0x140] sm:$0xff]
      %v225 = vld [vmem:[%s1 + $0x148] sm:$0xff]
      %v226 = vld [vmem:[%s1 + $0x150] sm:$0xff]
      %v227 = vld [vmem:[%s1 + $0x158] sm:$0xff]
      %v228 = vld [vmem:[%s1 + $0x160] sm:$0xff]
      %v229 = vld [vmem:[%s1 + $0x168] sm:$0xff]
      %v230 = vld [vmem:[%s1 + $0x170] sm:$0xff]
      %v231 = vld [vmem:[%s1 + $0x178] sm:$0xff]
      %v232 = vld [vmem:[%s1 + $0x180] sm:$0xff]
      %v233 = vld [vmem:[%s1 + $0x188] sm:$0xff]
      %v234 = vld [vmem:[%s1 + $0x190] sm:$0xff]
      %v235 = vld [vmem:[%s1 + $0x198] sm:$0xff]
      %v236 = vld [vmem:[%s1 + $0x1a0] sm:$0xff]
      %v237 = vld [vmem:[%s1 + $0x1a8] sm:$0xff]
      %vm238 = vcmask 130048
      %v240 = vsel %vm238, %v153, 0
      %v243 = vsel %vm238, %v155, 0
      %v246 = vsel %vm238, %v157, 0
      %v249 = vsel %vm238, %v159, 0
      %v252 = vsel %vm238, %v161, 0
      %v255 = vsel %vm238, %v163, 0
      %v258 = vsel %vm238, %v165, 0
      %v261 = vsel %vm238, %v167, 0
      %v264 = vsel %vm238, %v169, 0
      %v267 = vsel %vm238, %v171, 0
      %v270 = vsel %vm238, %v173, 0
      %v273 = vsel %vm238, %v175, 0
      %v276 = vsel %vm238, %v177, 0
      %v279 = vsel %vm238, %v179, 0
      %v282 = vsel %vm238, %v181, 0
      %v285 = vsel %vm238, %v183, 0
      %287 = vmatpush.msra.mxu0 %v229
      %288 = vmatpush.msra.mxu0 %v226
      %289 = vmatpush.msra.mxu0 %v223
      %290 = vmatpush.msra.mxu0 %v220
      %291 = vmatpush.msra.mxu0 %v217
      %292 = vmatpush.msra.mxu0 %v214
      %293 = vmatpush.msra.mxu0 %v211
      %294 = vmatpush.msra.mxu0 %v208
      %295 = vmatpush.msra.mxu0 %v205
      %296 = vmatpush.msra.mxu0 %v202
      %297 = vmatpush.msra.mxu0 %v199
      %298 = vmatpush.msra.mxu0 %v196
      %299 = vmatpush.msra.mxu0 %v193
      %300 = vmatpush.msra.mxu0 %v190
      %301 = vmatpush.msra.mxu0 %v187
      %302 = vmatpush.msra.mxu0 %v184
      %303 = vmatmul.f32.gmra.mxu0 %v152
      %v304 = vpop.f32.mrf.mxu0
      %v305 = vadd.f32 0.0, %v304
      %306 = vmatmul.f32.gmra.mxu0 %v154
      %v307 = vpop.f32.mrf.mxu0
      %v308 = vadd.f32 0.0, %v307
      %309 = vmatmul.f32.gmra.mxu0 %v156
      %v310 = vpop.f32.mrf.mxu0
      %v311 = vadd.f32 0.0, %v310
      %312 = vmatmul.f32.gmra.mxu0 %v158
      %v313 = vpop.f32.mrf.mxu0
      %v314 = vadd.f32 0.0, %v313
      %315 = vmatmul.f32.gmra.mxu0 %v160
      %v316 = vpop.f32.mrf.mxu0
      %v317 = vadd.f32 0.0, %v316
      %318 = vmatmul.f32.gmra.mxu0 %v162
      %v319 = vpop.f32.mrf.mxu0
      %v320 = vadd.f32 0.0, %v319
      %321 = vmatmul.f32.gmra.mxu0 %v164
      %v322 = vpop.f32.mrf.mxu0
      %v323 = vadd.f32 0.0, %v322
      %324 = vmatmul.f32.gmra.mxu0 %v166
      %v325 = vpop.f32.mrf.mxu0
      %v326 = vadd.f32 0.0, %v325
      %327 = vmatmul.f32.gmra.mxu0 %v168
      %v328 = vpop.f32.mrf.mxu0
      %v329 = vadd.f32 0.0, %v328
      %330 = vmatmul.f32.gmra.mxu0 %v170
      %v331 = vpop.f32.mrf.mxu0
      %v332 = vadd.f32 0.0, %v331
      %333 = vmatmul.f32.gmra.mxu0 %v172
      %v334 = vpop.f32.mrf.mxu0
      %v335 = vadd.f32 0.0, %v334
      %336 = vmatmul.f32.gmra.mxu0 %v174
      %v337 = vpop.f32.mrf.mxu0
      %v338 = vadd.f32 0.0, %v337
      %339 = vmatmul.f32.gmra.mxu0 %v176
      %v340 = vpop.f32.mrf.mxu0
      %v341 = vadd.f32 0.0, %v340
      %342 = vmatmul.f32.gmra.mxu0 %v178
      %v343 = vpop.f32.mrf.mxu0
      %v344 = vadd.f32 0.0, %v343
      %345 = vmatmul.f32.gmra.mxu0 %v180
      %v346 = vpop.f32.mrf.mxu0
      %v347 = vadd.f32 0.0, %v346
      %348 = vmatmul.f32.gmra.mxu0 %v182
      %v349 = vpop.f32.mrf.mxu0
      %v350 = vadd.f32 0.0, %v349
      %351 = vdwg.mxu0
      %352 = vmatpush.msra.mxu0 0.0
      %353 = vmatpush.msra.mxu0 0.0
      %354 = vmatpush.msra.mxu0 0.0
      %355 = vmatpush.msra.mxu0 0.0
      %356 = vmatpush.msra.mxu0 0.0
      %357 = vmatpush.msra.mxu0 0.0
      %358 = vmatpush.msra.mxu0 0.0
      %359 = vmatpush.msra.mxu0 0.0
      %360 = vmatpush.msra.mxu0 0.0
      %361 = vmatpush.msra.mxu0 0.0
      %362 = vmatpush.msra.mxu0 0.0
      %363 = vmatpush.msra.mxu0 0.0
      %364 = vmatpush.msra.mxu0 0.0
      %365 = vmatpush.msra.mxu0 0.0
      %366 = vmatpush.msra.mxu0 %v235
      %367 = vmatpush.msra.mxu0 %v232
      %368 = vmatmul.f32.gmra.mxu0 %v240
      %v369 = vpop.f32.mrf.mxu0
      %v370 = vadd.f32 %v305, %v369
      %371 = vmatmul.f32.gmra.mxu0 %v243
      %v372 = vpop.f32.mrf.mxu0
      %v373 = vadd.f32 %v308, %v372
      %374 = vmatmul.f32.gmra.mxu0 %v246
      %v375 = vpop.f32.mrf.mxu0
      %v376 = vadd.f32 %v311, %v375
      %377 = vmatmul.f32.gmra.mxu0 %v249
      %v378 = vpop.f32.mrf.mxu0
      %v379 = vadd.f32 %v314, %v378
      %380 = vmatmul.f32.gmra.mxu0 %v252
      %v381 = vpop.f32.mrf.mxu0
      %v382 = vadd.f32 %v317, %v381
      %383 = vmatmul.f32.gmra.mxu0 %v255
      %v384 = vpop.f32.mrf.mxu0
      %v385 = vadd.f32 %v320, %v384
      %386 = vmatmul.f32.gmra.mxu0 %v258
      %v387 = vpop.f32.mrf.mxu0
      %v388 = vadd.f32 %v323, %v387
      %389 = vmatmul.f32.gmra.mxu0 %v261
      %v390 = vpop.f32.mrf.mxu0
      %v391 = vadd.f32 %v326, %v390
      %392 = vmatmul.f32.gmra.mxu0 %v264
      %v393 = vpop.f32.mrf.mxu0
      %v394 = vadd.f32 %v329, %v393
      %395 = vmatmul.f32.gmra.mxu0 %v267
      %v396 = vpop.f32.mrf.mxu0
      %v397 = vadd.f32 %v332, %v396
      %398 = vmatmul.f32.gmra.mxu0 %v270
      %v399 = vpop.f32.mrf.mxu0
      %v400 = vadd.f32 %v335, %v399
      %401 = vmatmul.f32.gmra.mxu0 %v273
      %v402 = vpop.f32.mrf.mxu0
      %v403 = vadd.f32 %v338, %v402
      %404 = vmatmul.f32.gmra.mxu0 %v276
      %v405 = vpop.f32.mrf.mxu0
      %v406 = vadd.f32 %v341, %v405
      %407 = vmatmul.f32.gmra.mxu0 %v279
      %v408 = vpop.f32.mrf.mxu0
      %v409 = vadd.f32 %v344, %v408
      %410 = vmatmul.f32.gmra.mxu0 %v282
      %v411 = vpop.f32.mrf.mxu0
      %v412 = vadd.f32 %v347, %v411
      %413 = vmatmul.f32.gmra.mxu0 %v285
      %v414 = vpop.f32.mrf.mxu0
      %v415 = vadd.f32 %v350, %v414
      %416 = vdwg.mxu0
      %417 = vmatpush.msra.mxu0 %v230
      %418 = vmatpush.msra.mxu0 %v227
      %419 = vmatpush.msra.mxu0 %v224
      %420 = vmatpush.msra.mxu0 %v221
      %421 = vmatpush.msra.mxu0 %v218
      %422 = vmatpush.msra.mxu0 %v215
      %423 = vmatpush.msra.mxu0 %v212
      %424 = vmatpush.msra.mxu0 %v209
      %425 = vmatpush.msra.mxu0 %v206
      %426 = vmatpush.msra.mxu0 %v203
      %427 = vmatpush.msra.mxu0 %v200
      %428 = vmatpush.msra.mxu0 %v197
      %429 = vmatpush.msra.mxu0 %v194
      %430 = vmatpush.msra.mxu0 %v191
      %431 = vmatpush.msra.mxu0 %v188
      %432 = vmatpush.msra.mxu0 %v185
      %433 = vmatmul.f32.gmra.mxu0 %v152
      %v434 = vpop.f32.mrf.mxu0
      %v435 = vadd.f32 0.0, %v434
      %436 = vmatmul.f32.gmra.mxu0 %v154
      %v437 = vpop.f32.mrf.mxu0
      %v438 = vadd.f32 0.0, %v437
      %439 = vmatmul.f32.gmra.mxu0 %v156
      %v440 = vpop.f32.mrf.mxu0
      %v441 = vadd.f32 0.0, %v440
      %442 = vmatmul.f32.gmra.mxu0 %v158
      %v443 = vpop.f32.mrf.mxu0
      %v444 = vadd.f32 0.0, %v443
      %445 = vmatmul.f32.gmra.mxu0 %v160
      %v446 = vpop.f32.mrf.mxu0
      %v447 = vadd.f32 0.0, %v446
      %448 = vmatmul.f32.gmra.mxu0 %v162
      %v449 = vpop.f32.mrf.mxu0
      %v450 = vadd.f32 0.0, %v449
      %451 = vmatmul.f32.gmra.mxu0 %v164
      %v452 = vpop.f32.mrf.mxu0
      %v453 = vadd.f32 0.0, %v452
      %454 = vmatmul.f32.gmra.mxu0 %v166
      %v455 = vpop.f32.mrf.mxu0
      %v456 = vadd.f32 0.0, %v455
      %457 = vmatmul.f32.gmra.mxu0 %v168
      %v458 = vpop.f32.mrf.mxu0
      %v459 = vadd.f32 0.0, %v458
      %460 = vmatmul.f32.gmra.mxu0 %v170
      %v461 = vpop.f32.mrf.mxu0
      %v462 = vadd.f32 0.0, %v461
      %463 = vmatmul.f32.gmra.mxu0 %v172
      %v464 = vpop.f32.mrf.mxu0
      %v465 = vadd.f32 0.0, %v464
      %466 = vmatmul.f32.gmra.mxu0 %v174
      %v467 = vpop.f32.mrf.mxu0
      %v468 = vadd.f32 0.0, %v467
      %469 = vmatmul.f32.gmra.mxu0 %v176
      %v470 = vpop.f32.mrf.mxu0
      %v471 = vadd.f32 0.0, %v470
      %472 = vmatmul.f32.gmra.mxu0 %v178
      %v473 = vpop.f32.mrf.mxu0
      %v474 = vadd.f32 0.0, %v473
      %475 = vmatmul.f32.gmra.mxu0 %v180
      %v476 = vpop.f32.mrf.mxu0
      %v477 = vadd.f32 0.0, %v476
      %478 = vmatmul.f32.gmra.mxu0 %v182
      %v479 = vpop.f32.mrf.mxu0
      %v480 = vadd.f32 0.0, %v479
      %481 = vdwg.mxu0
      %482 = vmatpush.msra.mxu0 0.0
      %483 = vmatpush.msra.mxu0 0.0
      %484 = vmatpush.msra.mxu0 0.0
      %485 = vmatpush.msra.mxu0 0.0
      %486 = vmatpush.msra.mxu0 0.0
      %487 = vmatpush.msra.mxu0 0.0
      %488 = vmatpush.msra.mxu0 0.0
      %489 = vmatpush.msra.mxu0 0.0
      %490 = vmatpush.msra.mxu0 0.0
      %491 = vmatpush.msra.mxu0 0.0
      %492 = vmatpush.msra.mxu0 0.0
      %493 = vmatpush.msra.mxu0 0.0
      %494 = vmatpush.msra.mxu0 0.0
      %495 = vmatpush.msra.mxu0 0.0
      %496 = vmatpush.msra.mxu0 %v236
      %497 = vmatpush.msra.mxu0 %v233
      %498 = vmatmul.f32.gmra.mxu0 %v240
      %v499 = vpop.f32.mrf.mxu0
      %v500 = vadd.f32 %v435, %v499
      %501 = vmatmul.f32.gmra.mxu0 %v243
      %v502 = vpop.f32.mrf.mxu0
      %v503 = vadd.f32 %v438, %v502
      %504 = vmatmul.f32.gmra.mxu0 %v246
      %v505 = vpop.f32.mrf.mxu0
      %v506 = vadd.f32 %v441, %v505
      %507 = vmatmul.f32.gmra.mxu0 %v249
      %v508 = vpop.f32.mrf.mxu0
      %v509 = vadd.f32 %v444, %v508
      %510 = vmatmul.f32.gmra.mxu0 %v252
      %v511 = vpop.f32.mrf.mxu0
      %v512 = vadd.f32 %v447, %v511
      %513 = vmatmul.f32.gmra.mxu0 %v255
      %v514 = vpop.f32.mrf.mxu0
      %v515 = vadd.f32 %v450, %v514
      %516 = vmatmul.f32.gmra.mxu0 %v258
      %v517 = vpop.f32.mrf.mxu0
      %v518 = vadd.f32 %v453, %v517
      %519 = vmatmul.f32.gmra.mxu0 %v261
      %v520 = vpop.f32.mrf.mxu0
      %v521 = vadd.f32 %v456, %v520
      %522 = vmatmul.f32.gmra.mxu0 %v264
      %v523 = vpop.f32.mrf.mxu0
      %v524 = vadd.f32 %v459, %v523
      %525 = vmatmul.f32.gmra.mxu0 %v267
      %v526 = vpop.f32.mrf.mxu0
      %v527 = vadd.f32 %v462, %v526
      %528 = vmatmul.f32.gmra.mxu0 %v270
      %v529 = vpop.f32.mrf.mxu0
      %v530 = vadd.f32 %v465, %v529
      %531 = vmatmul.f32.gmra.mxu0 %v273
      %v532 = vpop.f32.mrf.mxu0
      %v533 = vadd.f32 %v468, %v532
      %534 = vmatmul.f32.gmra.mxu0 %v276
      %v535 = vpop.f32.mrf.mxu0
      %v536 = vadd.f32 %v471, %v535
      %537 = vmatmul.f32.gmra.mxu0 %v279
      %v538 = vpop.f32.mrf.mxu0
      %v539 = vadd.f32 %v474, %v538
      %540 = vmatmul.f32.gmra.mxu0 %v282
      %v541 = vpop.f32.mrf.mxu0
      %v542 = vadd.f32 %v477, %v541
      %543 = vmatmul.f32.gmra.mxu0 %v285
      %v544 = vpop.f32.mrf.mxu0
      %v545 = vadd.f32 %v480, %v544
      %546 = vdwg.mxu0
      %547 = vmatpush.msra.mxu0 %v231
      %548 = vmatpush.msra.mxu0 %v228
      %549 = vmatpush.msra.mxu0 %v225
      %550 = vmatpush.msra.mxu0 %v222
      %551 = vmatpush.msra.mxu0 %v219
      %552 = vmatpush.msra.mxu0 %v216
      %553 = vmatpush.msra.mxu0 %v213
      %554 = vmatpush.msra.mxu0 %v210
      %555 = vmatpush.msra.mxu0 %v207
      %556 = vmatpush.msra.mxu0 %v204
      %557 = vmatpush.msra.mxu0 %v201
      %558 = vmatpush.msra.mxu0 %v198
      %559 = vmatpush.msra.mxu0 %v195
      %560 = vmatpush.msra.mxu0 %v192
      %561 = vmatpush.msra.mxu0 %v189
      %562 = vmatpush.msra.mxu0 %v186
      %563 = vmatmul.f32.gmra.mxu0 %v152
      %v564 = vpop.f32.mrf.mxu0
      %v565 = vadd.f32 0.0, %v564
      %566 = vmatmul.f32.gmra.mxu0 %v154
      %v567 = vpop.f32.mrf.mxu0
      %v568 = vadd.f32 0.0, %v567
      %569 = vmatmul.f32.gmra.mxu0 %v156
      %v570 = vpop.f32.mrf.mxu0
      %v571 = vadd.f32 0.0, %v570
      %572 = vmatmul.f32.gmra.mxu0 %v158
      %v573 = vpop.f32.mrf.mxu0
      %v574 = vadd.f32 0.0, %v573
      %575 = vmatmul.f32.gmra.mxu0 %v160
      %v576 = vpop.f32.mrf.mxu0
      %v577 = vadd.f32 0.0, %v576
      %578 = vmatmul.f32.gmra.mxu0 %v162
      %v579 = vpop.f32.mrf.mxu0
      %v580 = vadd.f32 0.0, %v579
      %581 = vmatmul.f32.gmra.mxu0 %v164
      %v582 = vpop.f32.mrf.mxu0
      %v583 = vadd.f32 0.0, %v582
      %584 = vmatmul.f32.gmra.mxu0 %v166
      %v585 = vpop.f32.mrf.mxu0
      %v586 = vadd.f32 0.0, %v585
      %587 = vmatmul.f32.gmra.mxu0 %v168
      %v588 = vpop.f32.mrf.mxu0
      %v589 = vadd.f32 0.0, %v588
      %590 = vmatmul.f32.gmra.mxu0 %v170
      %v591 = vpop.f32.mrf.mxu0
      %v592 = vadd.f32 0.0, %v591
      %593 = vmatmul.f32.gmra.mxu0 %v172
      %v594 = vpop.f32.mrf.mxu0
      %v595 = vadd.f32 0.0, %v594
      %596 = vmatmul.f32.gmra.mxu0 %v174
      %v597 = vpop.f32.mrf.mxu0
      %v598 = vadd.f32 0.0, %v597
      %599 = vmatmul.f32.gmra.mxu0 %v176
      %v600 = vpop.f32.mrf.mxu0
      %v601 = vadd.f32 0.0, %v600
      %602 = vmatmul.f32.gmra.mxu0 %v178
      %v603 = vpop.f32.mrf.mxu0
      %v604 = vadd.f32 0.0, %v603
      %605 = vmatmul.f32.gmra.mxu0 %v180
      %v606 = vpop.f32.mrf.mxu0
      %v607 = vadd.f32 0.0, %v606
      %608 = vmatmul.f32.gmra.mxu0 %v182
      %v609 = vpop.f32.mrf.mxu0
      %v610 = vadd.f32 0.0, %v609
      %611 = vdwg.mxu0
      %612 = vmatpush.msra.mxu0 0.0
      %613 = vmatpush.msra.mxu0 0.0
      %614 = vmatpush.msra.mxu0 0.0
      %615 = vmatpush.msra.mxu0 0.0
      %616 = vmatpush.msra.mxu0 0.0
      %617 = vmatpush.msra.mxu0 0.0
      %618 = vmatpush.msra.mxu0 0.0
      %619 = vmatpush.msra.mxu0 0.0
      %620 = vmatpush.msra.mxu0 0.0
      %621 = vmatpush.msra.mxu0 0.0
      %622 = vmatpush.msra.mxu0 0.0
      %623 = vmatpush.msra.mxu0 0.0
      %624 = vmatpush.msra.mxu0 0.0
      %625 = vmatpush.msra.mxu0 0.0
      %626 = vmatpush.msra.mxu0 %v237
      %627 = vmatpush.msra.mxu0 %v234
      %628 = vmatmul.f32.gmra.mxu0 %v240
      %v629 = vpop.f32.mrf.mxu0
      %v630 = vadd.f32 %v565, %v629
      %631 = vmatmul.f32.gmra.mxu0 %v243
      %v632 = vpop.f32.mrf.mxu0
      %v633 = vadd.f32 %v568, %v632
      %634 = vmatmul.f32.gmra.mxu0 %v246
      %v635 = vpop.f32.mrf.mxu0
      %v636 = vadd.f32 %v571, %v635
      %637 = vmatmul.f32.gmra.mxu0 %v249
      %v638 = vpop.f32.mrf.mxu0
      %v639 = vadd.f32 %v574, %v638
      %640 = vmatmul.f32.gmra.mxu0 %v252
      %v641 = vpop.f32.mrf.mxu0
      %v642 = vadd.f32 %v577, %v641
      %643 = vmatmul.f32.gmra.mxu0 %v255
      %v644 = vpop.f32.mrf.mxu0
      %v645 = vadd.f32 %v580, %v644
      %646 = vmatmul.f32.gmra.mxu0 %v258
      %v647 = vpop.f32.mrf.mxu0
      %v648 = vadd.f32 %v583, %v647
      %649 = vmatmul.f32.gmra.mxu0 %v261
      %v650 = vpop.f32.mrf.mxu0
      %v651 = vadd.f32 %v586, %v650
      %652 = vmatmul.f32.gmra.mxu0 %v264
      %v653 = vpop.f32.mrf.mxu0
      %v654 = vadd.f32 %v589, %v653
      %655 = vmatmul.f32.gmra.mxu0 %v267
      %v656 = vpop.f32.mrf.mxu0
      %v657 = vadd.f32 %v592, %v656
      %658 = vmatmul.f32.gmra.mxu0 %v270
      %v659 = vpop.f32.mrf.mxu0
      %v660 = vadd.f32 %v595, %v659
      %661 = vmatmul.f32.gmra.mxu0 %v273
      %v662 = vpop.f32.mrf.mxu0
      %v663 = vadd.f32 %v598, %v662
      %664 = vmatmul.f32.gmra.mxu0 %v276
      %v665 = vpop.f32.mrf.mxu0
      %v666 = vadd.f32 %v601, %v665
      %667 = vmatmul.f32.gmra.mxu0 %v279
      %v668 = vpop.f32.mrf.mxu0
      %v669 = vadd.f32 %v604, %v668
      %670 = vmatmul.f32.gmra.mxu0 %v282
      %v671 = vpop.f32.mrf.mxu0
      %v672 = vadd.f32 %v607, %v671
      %673 = vmatmul.f32.gmra.mxu0 %v285
      %v674 = vpop.f32.mrf.mxu0
      %v675 = vadd.f32 %v610, %v674
      %676 = vdwg.mxu0
      %677 = vst [vmem:[%s150] sm:$0xff] %v370
      %678 = vst [vmem:[%s150 + $0x8] sm:$0xff] %v500
      %vm679 = vcmask 261120
      %680 = vst.msk [vmem:[%s150 + $0x10] sm:$0xff] %vm679, %v630
      %681 = vst [vmem:[%s150 + $0x18] sm:$0xff] %v373
      %682 = vst [vmem:[%s150 + $0x20] sm:$0xff] %v503
      %683 = vst.msk [vmem:[%s150 + $0x28] sm:$0xff] %vm679, %v633
      %684 = vst [vmem:[%s150 + $0x30] sm:$0xff] %v376
      %685 = vst [vmem:[%s150 + $0x38] sm:$0xff] %v506
      %686 = vst.msk [vmem:[%s150 + $0x40] sm:$0xff] %vm679, %v636
      %687 = vst [vmem:[%s150 + $0x48] sm:$0xff] %v379
      %688 = vst [vmem:[%s150 + $0x50] sm:$0xff] %v509
      %689 = vst.msk [vmem:[%s150 + $0x58] sm:$0xff] %vm679, %v639
      %690 = vst [vmem:[%s150 + $0x60] sm:$0xff] %v382
      %691 = vst [vmem:[%s150 + $0x68] sm:$0xff] %v512
      %692 = vst.msk [vmem:[%s150 + $0x70] sm:$0xff] %vm679, %v642
      %693 = vst [vmem:[%s150 + $0x78] sm:$0xff] %v385
      %694 = vst [vmem:[%s150 + $0x80] sm:$0xff] %v515
      %695 = vst.msk [vmem:[%s150 + $0x88] sm:$0xff] %vm679, %v645
      %696 = vst [vmem:[%s150 + $0x90] sm:$0xff] %v388
      %697 = vst [vmem:[%s150 + $0x98] sm:$0xff] %v518
      %698 = vst.msk [vmem:[%s150 + $0xa0] sm:$0xff] %vm679, %v648
      %699 = vst [vmem:[%s150 + $0xa8] sm:$0xff] %v391
      %700 = vst [vmem:[%s150 + $0xb0] sm:$0xff] %v521
      %701 = vst.msk [vmem:[%s150 + $0xb8] sm:$0xff] %vm679, %v651
      %702 = vst [vmem:[%s150 + $0xc0] sm:$0xff] %v394
      %703 = vst [vmem:[%s150 + $0xc8] sm:$0xff] %v524
      %704 = vst.msk [vmem:[%s150 + $0xd0] sm:$0xff] %vm679, %v654
      %705 = vst [vmem:[%s150 + $0xd8] sm:$0xff] %v397
      %706 = vst [vmem:[%s150 + $0xe0] sm:$0xff] %v527
      %707 = vst.msk [vmem:[%s150 + $0xe8] sm:$0xff] %vm679, %v657
      %708 = vst [vmem:[%s150 + $0xf0] sm:$0xff] %v400
      %709 = vst [vmem:[%s150 + $0xf8] sm:$0xff] %v530
      %710 = vst.msk [vmem:[%s150 + $0x100] sm:$0xff] %vm679, %v660
      %711 = vst [vmem:[%s150 + $0x108] sm:$0xff] %v403
      %712 = vst [vmem:[%s150 + $0x110] sm:$0xff] %v533
      %713 = vst.msk [vmem:[%s150 + $0x118] sm:$0xff] %vm679, %v663
      %714 = vst [vmem:[%s150 + $0x120] sm:$0xff] %v406
      %715 = vst [vmem:[%s150 + $0x128] sm:$0xff] %v536
      %716 = vst.msk [vmem:[%s150 + $0x130] sm:$0xff] %vm679, %v666
      %717 = vst [vmem:[%s150 + $0x138] sm:$0xff] %v409
      %718 = vst [vmem:[%s150 + $0x140] sm:$0xff] %v539
      %719 = vst.msk [vmem:[%s150 + $0x148] sm:$0xff] %vm679, %v669
      %720 = vst [vmem:[%s150 + $0x150] sm:$0xff] %v412
      %721 = vst [vmem:[%s150 + $0x158] sm:$0xff] %v542
      %722 = vst.msk [vmem:[%s150 + $0x160] sm:$0xff] %vm679, %v672
      %723 = vst [vmem:[%s150 + $0x168] sm:$0xff] %v415
      %724 = vst [vmem:[%s150 + $0x170] sm:$0xff] %v545
      %725 = vst.msk [vmem:[%s150 + $0x178] sm:$0xff] %vm679, %v675
      %s726 = smul.u32 16, %s13
      %p727 = scmp.lt.s32.totalorder %s726, 31
      %s728 = scalar_select %p727, %s726, 31
      %s729 = smul.addr %s728, 3
      %s730 = smul.addr %s729, 8
      %s731 = scalar_lea.vmem %s2, %s730
      // Predicated region
      $region29: #{tpu_custom_call.1} parent=27 // pred_check
        %p732 = pneg %p78
      $region30: #{tpu_custom_call.1} parent=27 // pred_check_branch
        %734 = sbr.rel (%p732) target = $region32
      $region31: #{tpu_custom_call.1} parent=27 // pred_region
        %s735 = smul.u32 16, %s13
      $region32: #{tpu_custom_call.1} parent=27 // pred_fallthru
        _
    $region28: #{tpu_custom_call.1} parent=5 // pred_fallthru
      _
    %p736 = scmp.le.s32.totalorder 2, %s8
    // Predicated region
    $region33: #{tpu_custom_call.1} parent=5 // pred_check
      %p737 = pneg %p736
    $region34: #{tpu_custom_call.1} parent=5 // pred_check_branch
      %739 = sbr.rel (%p737) target = $region36
    $region35: #{tpu_custom_call.1} parent=5 // pred_region
      %s740 = ssub.s32 %s8, 2
      // Predicated region
      $region37: #{tpu_custom_call.1} parent=35 // pred_check
        %p741 = pneg %p84
      $region38: #{tpu_custom_call.1} parent=35 // pred_check_branch
        %743 = sbr.rel (%p741) target = $region40
      $region39: #{tpu_custom_call.1} parent=35 // pred_region
        %s744 = smul.u32 16, %s14
        %p745 = scmp.lt.s32.totalorder %s744, 31
        %s746 = scalar_select %p745, %s744, 31
        %s747 = smul.addr %s746, 3
        %s748 = smul.addr %s747, 8
        %s749 = scalar_lea.vmem %s2, %s748
      $region40: #{tpu_custom_call.1} parent=35 // pred_fallthru
        _
    $region36: #{tpu_custom_call.1} parent=5 // pred_fallthru
      _
  $region6: #{tpu_custom_call.1} parent=0 // loop_footer
    %s12 = sadd.s32 1, %s8
  $region7: #{tpu_custom_call.1} parent=0 // loop_footer_branch
    %7 = sbr.rel target = $region3
  $region8: #{tpu_custom_call.1} parent=0 // loop_exit
    _

</llo_original>
